<compile_context>
chip_gen: v7x
topology: tpu7x:2x2x1
jax: 0.10.0
libtpu: 0.0.40
codegen_flags: <defaults>
</compile_context>

<pallas_src>
import functools

import jax
import jax.numpy as jnp
from jax.experimental import pallas as pl
from jax.experimental.pallas import tpu as pltpu

LANE = 128


def _round_up(x: int, m: int) -> int:
    return (x + m - 1) // m * m


@functools.lru_cache(maxsize=1)
def _device_kind() -> str:
    try:
        return jax.devices()[0].device_kind.lower()
    except Exception:  # pragma: no cover - non-TPU fallback
        return ""


def _num_tensorcores() -> int:
    k = _device_kind()
    return 2 if ("v7" in k or "7x" in k or "v4" in k) else 1


def _max_tile_rows() -> int:
    k = _device_kind()
    if "v6" in k or "v7" in k or "7x" in k:
        return 4096   # 2 MiB f32 blocks; fits 32 MiB scoped VMEM with margin
    return 2048       # v5e & unknown: stay well inside 16 MiB scoped VMEM


def _granule(*arrays) -> int:
    """Sublane packing granule of the narrowest streamed dtype."""
    g = 8
    for a in arrays:
        isz = jnp.dtype(a.dtype).itemsize
        if isz < 4:
            g = max(g, 32 // isz)   # 16 for bf16, 32 for int8/bool
    return g


def _to_rows(x, total_rows: int):
    """Flatten to a lane-dense (total_rows, 128) slab (zero-padded)."""
    flat = x.reshape(-1)
    pad = total_rows * LANE - flat.shape[0]
    if pad:
        flat = jnp.pad(flat, (0, pad))
    return flat.reshape(total_rows, LANE)


def _broadcast_decomposition(out_shape, mask_shape):
    """Return (outer, rep, inner) with out ~ (outer, rep, inner) and
    mask ~ (outer, inner), or None if the broadcast isn't one contiguous block."""
    nd = len(out_shape)
    if len(mask_shape) > nd:
        return None
    m = (1,) * (nd - len(mask_shape)) + tuple(mask_shape)
    for mo, oo in zip(m, out_shape):
        if mo != oo and mo != 1:
            return None          # not broadcastable
    bcast = [i for i in range(nd) if m[i] == 1 and out_shape[i] != 1]
    if not bcast:
        return None              # nothing to broadcast
    a, b = min(bcast), max(bcast)
    if any(m[i] != 1 for i in range(a, b + 1)):
        return None              # broadcast axes not contiguous in the mask
    outer = 1
    for i in range(a):
        outer *= out_shape[i]
    rep = 1
    for i in range(a, b + 1):
        rep *= out_shape[i]
    inner = 1
    for i in range(b + 1, nd):
        inner *= out_shape[i]
    return outer, rep, inner


# --------------------------------------------------------------------------
# Kernels
# --------------------------------------------------------------------------
def _mse_rows_nomask_kernel(o_ref, l_ref, num_ref, acc_n, *,
                            tile_rows, tiles_per_core, valid_rows):
    c = pl.program_id(0)
    i = pl.program_id(1)

    @pl.when(i == 0)
    def _():
        acc_n[...] = jnp.zeros_like(acc_n)

    d = o_ref[...].astype(jnp.float32) - l_ref[...].astype(jnp.float32)
    sq = d * d
    g8 = tile_rows // 8
    t = c * tiles_per_core + i                  # logical (unclamped) tile index
    full = (t + 1) * tile_rows <= valid_rows    # interior tile: no masking

    @pl.when(full)
    def _():
        acc_n[...] += sq.reshape(g8, 8, LANE).sum(axis=0)

    @pl.when(jnp.logical_not(full))
    def _():
        row = t * tile_rows + jax.lax.broadcasted_iota(
            jnp.int32, (tile_rows, LANE), 0)
        valid = row < valid_rows
        # select (not multiply) so garbage/NaN rows never reach the accumulator
        acc_n[...] += jnp.where(valid, sq, 0.0).reshape(g8, 8, LANE).sum(axis=0)

    @pl.when(i == pl.num_programs(1) - 1)
    def _():
        num_ref[...] = acc_n[...]


def _mse_rows_masked_kernel(o_ref, l_ref, m_ref, num_ref, den_ref,
                            acc_n, acc_d, *,
                            tile_rows, tiles_per_core, valid_rows):
    c = pl.program_id(0)
    i = pl.program_id(1)

    @pl.when(i == 0)
    def _():
        acc_n[...] = jnp.zeros_like(acc_n)
        acc_d[...] = jnp.zeros_like(acc_d)

    d = o_ref[...].astype(jnp.float32) - l_ref[...].astype(jnp.float32)
    m = m_ref[...].astype(jnp.float32)          # 1-byte mask widened per tile
    num_v = d * d * m
    g8 = tile_rows // 8
    t = c * tiles_per_core + i
    full = (t + 1) * tile_rows <= valid_rows

    @pl.when(full)
    def _():
        acc_n[...] += num_v.reshape(g8, 8, LANE).sum(axis=0)
        acc_d[...] += m.reshape(g8, 8, LANE).sum(axis=0)

    @pl.when(jnp.logical_not(full))
    def _():
        row = t * tile_rows + jax.lax.broadcasted_iota(
            jnp.int32, (tile_rows, LANE), 0)
        valid = row < valid_rows
        acc_n[...] += jnp.where(valid, num_v, 0.0).reshape(g8, 8, LANE).sum(axis=0)
        acc_d[...] += jnp.where(valid, m, 0.0).reshape(g8, 8, LANE).sum(axis=0)

    @pl.when(i == pl.num_programs(1) - 1)
    def _():
        num_ref[...] = acc_n[...]
        den_ref[...] = acc_d[...]


def _mse_bcast_masked_kernel(o_ref, l_ref, m_ref, num_ref, den_ref,
                             acc_n, acc_d, *, tile_o, outer):
    """Masked MSE where the mask block (index ignores the rep axis) is reused
    across the broadcast dimension - no materialized broadcast mask."""
    ot = pl.program_id(0)
    r = pl.program_id(1)

    @pl.when((ot == 0) & (r == 0))
    def _():
        acc_n[...] = jnp.zeros_like(acc_n)
        acc_d[...] = jnp.zeros_like(acc_d)

    x = o_ref[...].astype(jnp.float32)          # (tile_o, 1, inner128, 128)
    y = l_ref[...].astype(jnp.float32)
    m = m_ref[...].astype(jnp.float32)
    d = x - y
    num_v = d * d * m
    shp = num_v.shape
    g8 = (shp[0] * shp[1] * shp[2]) // 8
    full = (ot + 1) * tile_o <= outer

    @pl.when(full)
    def _():
        acc_n[...] += num_v.reshape(g8, 8, LANE).sum(axis=0)
        acc_d[...] += m.reshape(g8, 8, LANE).sum(axis=0)

    @pl.when(jnp.logical_not(full))
    def _():
        oid = ot * tile_o + jax.lax.broadcasted_iota(jnp.int32, shp, 0)
        valid = oid < outer
        acc_n[...] += jnp.where(valid, num_v, 0.0).reshape(g8, 8, LANE).sum(axis=0)
        acc_d[...] += jnp.where(valid, m, 0.0).reshape(g8, 8, LANE).sum(axis=0)

    @pl.when((ot == pl.num_programs(0) - 1) & (r == pl.num_programs(1) - 1))
    def _():
        num_ref[...] = acc_n[...]
        den_ref[...] = acc_d[...]


# --------------------------------------------------------------------------
# Layer
# --------------------------------------------------------------------------
class BaseLossLayer:
    """JAX/Pallas analogue of the PyTorch BaseLossLayer."""

    has_unit = False

    def __init__(self, coe: float, manager=None, *args, **kwargs):
        self.trainable = False
        self.manager = manager
        self.coe = float(coe)

    @property
    def picker(self):
        return self.manager.picker

    def get_input(self, inputs, dtype):
        return self.manager.manager.model.get_input(inputs, dtype)

    def get_label(self, labels, dtype):
        return self.manager.manager.model.get_label(labels, dtype)

    # ------------------------------------------------------------------
    # Row-tiled streaming reduction over a lane-dense (rows, 128) slab.
    # ------------------------------------------------------------------
    def _rows_reduce(self, out, lab, m_full, max_rows):
        n = int(out.size)
        rows = pl.cdiv(n, LANE)
        streams = (out, lab) if m_full is None else (out, lab, m_full)
        g = _granule(*streams)

        if rows > max_rows:
            tile_rows = max_rows       # multiple of 32: satisfies any granule
            slab_rows = rows           # ragged tail masked in-kernel
        else:
            tile_rows = _round_up(max(rows, 1), g)   # single full-dim tile
            slab_rows = tile_rows                    # tiny zero-pad, no garbage

        o2d = _to_rows(out, slab_rows)
        l2d = _to_rows(lab, slab_rows)

        total_tiles = pl.cdiv(slab_rows, tile_rows)
        ncores = min(_num_tensorcores(), total_tiles)
        tiles_per_core = pl.cdiv(total_tiles, ncores)
        grid = (ncores, tiles_per_core)

        def in_map(c, i):
            # clamp so tail cores never request a fully out-of-bounds block;
            # duplicated rows are zeroed by the in-kernel validity mask
            return (jnp.minimum(c * tiles_per_core + i, total_tiles - 1), 0)

        in_spec = pl.BlockSpec((tile_rows, LANE), in_map)
        out_spec = pl.BlockSpec((None, 8, LANE), lambda c, i: (c, 0, 0))
        part = jax.ShapeDtypeStruct((ncores, 8, LANE), jnp.float32)
        cparams = pltpu.CompilerParams(
            dimension_semantics=("parallel", "arbitrary"))
        out_bytes = ncores * 8 * LANE * 4
        in_bytes = (int(o2d.size) * o2d.dtype.itemsize
                    + int(l2d.size) * l2d.dtype.itemsize)

        if m_full is None:
            kernel = functools.partial(
                _mse_rows_nomask_kernel, tile_rows=tile_rows,
                tiles_per_core=tiles_per_core, valid_rows=slab_rows)
            num_part = pl.pallas_call(
                kernel,
                out_shape=part,
                grid_spec=pltpu.PrefetchScalarGridSpec(
                    num_scalar_prefetch=0, grid=grid,
                    in_specs=[in_spec, in_spec],
                    out_specs=out_spec,
                    scratch_shapes=[pltpu.VMEM((8, LANE), jnp.float32)]),
                compiler_params=cparams,
                cost_estimate=pl.CostEstimate(
                    flops=3 * n, transcendentals=0,
                    bytes_accessed=in_bytes + out_bytes),
            )(o2d, l2d)
            return jnp.sum(num_part), None

        m2d = _to_rows(m_full, slab_rows)
        in_bytes += int(m2d.size) * m2d.dtype.itemsize
        kernel = functools.partial(
            _mse_rows_masked_kernel, tile_rows=tile_rows,
            tiles_per_core=tiles_per_core, valid_rows=slab_rows)
        num_part, den_part = pl.pallas_call(
            kernel,
            out_shape=(part, part),
            grid_spec=pltpu.PrefetchScalarGridSpec(
                num_scalar_prefetch=0, grid=grid,
                in_specs=[in_spec, in_spec, in_spec],
                out_specs=[out_spec, out_spec],
                scratch_shapes=[pltpu.VMEM((8, LANE), jnp.float32),
                                pltpu.VMEM((8, LANE), jnp.float32)]),
            compiler_params=cparams,
            cost_estimate=pl.CostEstimate(
                flops=5 * n, transcendentals=0,
                bytes_accessed=in_bytes + 2 * out_bytes),
        )(o2d, l2d, m2d)
        return jnp.sum(num_part), jnp.sum(den_part)

    # ------------------------------------------------------------------
    # Broadcast-aware masked reduction: mask block reused across `rep`.
    # ------------------------------------------------------------------
    def _bcast_reduce(self, out, lab, mask, outer, rep, inner128, tile_o):
        o4 = out.reshape(outer, rep, inner128, LANE)
        l4 = lab.reshape(outer, rep, inner128, LANE)
        m4 = mask.reshape(outer, 1, inner128, LANE)

        grid = (pl.cdiv(outer, tile_o), rep)   # rep innermost: mask block index
                                               # is constant across it -> one DMA
        data_spec = pl.BlockSpec((tile_o, 1, inner128, LANE),
                                 lambda ot, r: (ot, r, 0, 0))
        mask_spec = pl.BlockSpec((tile_o, 1, inner128, LANE),
                                 lambda ot, r: (ot, 0, 0, 0))
        out_spec = pl.BlockSpec((8, LANE), lambda ot, r: (0, 0))
        part = jax.ShapeDtypeStruct((8, LANE), jnp.float32)

        n = int(out.size)
        in_bytes = (int(o4.size) * o4.dtype.itemsize
                    + int(l4.size) * l4.dtype.itemsize
                    + int(m4.size) * m4.dtype.itemsize)
        kernel = functools.partial(_mse_bcast_masked_kernel,
                                   tile_o=tile_o, outer=outer)
        num_part, den_part = pl.pallas_call(
            kernel,
            out_shape=(part, part),
            grid_spec=pltpu.PrefetchScalarGridSpec(
                num_scalar_prefetch=0, grid=grid,
                in_specs=[data_spec, data_spec, mask_spec],
                out_specs=[out_spec, out_spec],
                scratch_shapes=[pltpu.VMEM((8, LANE), jnp.float32),
                                pltpu.VMEM((8, LANE), jnp.float32)]),
            compiler_params=pltpu.CompilerParams(
                dimension_semantics=("arbitrary", "arbitrary")),
            cost_estimate=pl.CostEstimate(
                flops=6 * n, transcendentals=0,
                bytes_accessed=in_bytes + 2 * 8 * LANE * 4),
        )(o4, l4, m4)
        return jnp.sum(num_part), jnp.sum(den_part)

    # ------------------------------------------------------------------
    def forward(self, outputs, labels, inputs, mask=None, training=None,
                *args, **kwargs):
        out = outputs[0]
        lab = labels[0]
        n = int(out.size)
        max_rows = _max_tile_rows()

        if mask is None:
            num, _ = self._rows_reduce(out, lab, None, max_rows)
            # divide by the exact Python ratio (avoids f32(n) rounding at n>2^24)
            return num * (self.coe / float(n))

        mask = jnp.asarray(mask)
        if mask.dtype == jnp.bool_:
            mask = mask.astype(jnp.int8)   # 1-byte stream, widened in-kernel

        # Broadcast-aware path: reuse the un-materialized mask across `rep`.
        decomp = _broadcast_decomposition(out.shape, mask.shape)
        if decomp is not None:
            outer, rep, inner = decomp
            inner128 = inner // LANE
            if inner % (8 * LANE) == 0 and 0 < inner128 <= max_rows:
                tile_o = max(1, min(outer, max_rows // inner128))
                steps_bcast = pl.cdiv(outer, tile_o) * rep
                steps_rows = pl.cdiv(pl.cdiv(n, LANE), max_rows)
                if steps_bcast <= max(4 * steps_rows, 32):
                    num, den = self._bcast_reduce(out, lab, mask,
                                                  outer, rep, inner128, tile_o)
                    return jnp.float32(self.coe) * num / jnp.maximum(den, 1.0)

        # Fallback: materialize the (1-byte) broadcast mask and stream 3 arrays.
        m_full = jnp.broadcast_to(mask, out.shape)
        num, den = self._rows_reduce(out, lab, m_full, max_rows)
        return jnp.float32(self.coe) * num / jnp.maximum(den, 1.0)

    def __call__(self, *args, **kwargs):
        return self.forward(*args, **kwargs)


if __name__ == "__main__":
    key = jax.random.PRNGKey(0)
    k1, k2, k3 = jax.random.split(key, 3)

    # NCHW, small shapes; H*W = 1024 exercises the broadcast-aware masked kernel.
    B, C, H, W = 2, 4, 32, 32
    out = jax.random.normal(k1, (B, C, H, W), dtype=jnp.float32)
    lab = jax.random.normal(k2, (B, C, H, W), dtype=jnp.float32)
    msk_b = jax.random.uniform(k3, (B, 1, H, W)) > 0.5        # bool [B,1,H,W]
    msk_full_b = jnp.broadcast_to(msk_b, (B, C, H, W))        # bool [B,C,H,W]
    x_in = out  # "inputs" list is passed through untouched by the base layer

    layer = BaseLossLayer(coe=0.5, manager=None)

    loss_bcast = layer([out], [lab], [x_in], mask=msk_b)       # broadcast kernel
    loss_full = layer([out], [lab], [x_in], mask=msk_full_b)   # row-tiled masked
    loss_plain = layer([out], [lab], [x_in], mask=None)        # row-tiled unmasked
    jax.block_until_ready((loss_bcast, loss_full, loss_plain))

    # reference check in plain JAX
    m_full = msk_full_b.astype(jnp.float32)
    d2 = (out - lab) ** 2
    ref_masked = 0.5 * jnp.sum(m_full * d2) / jnp.maximum(jnp.sum(m_full), 1.0)
    ref_plain = 0.5 * jnp.mean(d2)
    assert jnp.allclose(loss_bcast, ref_masked, rtol=1e-5, atol=1e-6), (
        loss_bcast, ref_masked)
    assert jnp.allclose(loss_full, ref_masked, rtol=1e-5, atol=1e-6), (
        loss_full, ref_masked)
    assert jnp.allclose(loss_plain, ref_plain, rtol=1e-5, atol=1e-6), (
        loss_plain, ref_plain)

    print("KERNEL_OK")
</pallas_src>

<mosaic_0001>
module attributes {stable_mosaic.version = 11 : i64} {
  func.func @_mse_bcast_masked_kernel(%arg0: i32, %arg1: i32, %arg2: memref<2x1x8x128xf32, #tpu.memory_space<vmem>>, %arg3: memref<2x1x8x128xf32, #tpu.memory_space<vmem>>, %arg4: memref<2x1x8x128xi8, #tpu.memory_space<vmem>>, %arg5: memref<8x128xf32, #tpu.memory_space<vmem>>, %arg6: memref<8x128xf32, #tpu.memory_space<vmem>>, %arg7: memref<8x128xf32, #tpu.memory_space<vmem>>, %arg8: memref<8x128xf32, #tpu.memory_space<vmem>>) attributes {dimension_semantics = [#tpu.dimension_semantics<arbitrary>, #tpu.dimension_semantics<arbitrary>], iteration_bounds = array<i64: 1, 4>, scalar_prefetch = 0 : i64, scratch_operands = 2 : i64, tpu.core_type = #tpu.core_type<tc>, window_params = [{transform_indices = @transform_0, window_bounds = array<i64: 2, 1, 8, 128>}, {transform_indices = @transform_1, window_bounds = array<i64: 2, 1, 8, 128>}, {transform_indices = @transform_2, window_bounds = array<i64: 2, 1, 8, 128>}, {pipeline_mode = #tpu.pipeline_mode<synchronous>, transform_indices = @transform_3, window_bounds = array<i64: 8, 128>}, {pipeline_mode = #tpu.pipeline_mode<synchronous>, transform_indices = @transform_4, window_bounds = array<i64: 8, 128>}]} {
    %c0_i32 = arith.constant 0 : i32
    %0 = arith.cmpi eq, %arg0, %c0_i32 : i32
    %c0_i32_0 = arith.constant 0 : i32
    %1 = arith.cmpi eq, %arg1, %c0_i32_0 : i32
    %2 = arith.andi %0, %1 : i1
    %3 = arith.extui %2 : i1 to i32
    %c0_i32_1 = arith.constant 0 : i32
    %4 = arith.cmpi ne, %3, %c0_i32_1 : i32
    scf.if %4 {
      %cst = arith.constant 0.000000e+00 : f32
      %25 = vector.broadcast %cst : f32 to vector<8x128xf32>
      %c0_18 = arith.constant 0 : index
      %c0_19 = arith.constant 0 : index
      %26 = vector.load %arg7[%c0_18, %c0_19] : memref<8x128xf32, #tpu.memory_space<vmem>>, vector<8x128xf32>
      tpu.vector_store %arg7[%c0_18, %c0_19], %25 {strides = array<i32>} : memref<8x128xf32, #tpu.memory_space<vmem>>, vector<8x128xf32>,
      %cst_20 = arith.constant 0.000000e+00 : f32
      %27 = vector.broadcast %cst_20 : f32 to vector<8x128xf32>
      %c0_21 = arith.constant 0 : index
      %c0_22 = arith.constant 0 : index
      %28 = vector.load %arg8[%c0_21, %c0_22] : memref<8x128xf32, #tpu.memory_space<vmem>>, vector<8x128xf32>
      tpu.vector_store %arg8[%c0_21, %c0_22], %27 {strides = array<i32>} : memref<8x128xf32, #tpu.memory_space<vmem>>, vector<8x128xf32>,
    } else {
    }
    %c0 = arith.constant 0 : index
    %c0_2 = arith.constant 0 : index
    %c0_3 = arith.constant 0 : index
    %c0_4 = arith.constant 0 : index
    %5 = vector.load %arg2[%c0, %c0_2, %c0_3, %c0_4] : memref<2x1x8x128xf32, #tpu.memory_space<vmem>>, vector<2x1x8x128xf32>
    %c0_5 = arith.constant 0 : index
    %c0_6 = arith.constant 0 : index
    %c0_7 = arith.constant 0 : index
    %c0_8 = arith.constant 0 : index
    %6 = vector.load %arg3[%c0_5, %c0_6, %c0_7, %c0_8] : memref<2x1x8x128xf32, #tpu.memory_space<vmem>>, vector<2x1x8x128xf32>
    %c0_9 = arith.constant 0 : index
    %c0_10 = arith.constant 0 : index
    %c0_11 = arith.constant 0 : index
    %c0_12 = arith.constant 0 : index
    %7 = vector.load %arg4[%c0_9, %c0_10, %c0_11, %c0_12] : memref<2x1x8x128xi8, #tpu.memory_space<vmem>>, vector<2x1x8x128xi8>
    %8 = arith.sitofp %7 : vector<2x1x8x128xi8> to vector<2x1x8x128xf32>
    %9 = arith.subf %5, %6 : vector<2x1x8x128xf32>
    %10 = arith.mulf %9, %9 : vector<2x1x8x128xf32>
    %11 = arith.mulf %10, %8 : vector<2x1x8x128xf32>
    %c1_i32 = arith.constant 1 : i32
    %12 = arith.addi %arg0, %c1_i32 : i32
    %c2_i32 = arith.constant 2 : i32
    %13 = arith.muli %12, %c2_i32 : i32
    %c2_i32_13 = arith.constant 2 : i32
    %14 = arith.cmpi sle, %13, %c2_i32_13 : i32
    %15 = arith.extui %14 : i1 to i32
    %c0_i32_14 = arith.constant 0 : i32
    %16 = arith.cmpi ne, %15, %c0_i32_14 : i32
    scf.if %16 {
      %c0_18 = arith.constant 0 : index
      %c0_19 = arith.constant 0 : index
      %25 = vector.load %arg7[%c0_18, %c0_19] : memref<8x128xf32, #tpu.memory_space<vmem>>, vector<8x128xf32>
      %26 = vector.shape_cast %11 : vector<2x1x8x128xf32> to vector<2x8x128xf32>
      %cst = arith.constant dense<0.000000e+00> : vector<8x128xf32>
      %27 = vector.multi_reduction <add>, %26, %cst [0] : vector<2x8x128xf32> to vector<8x128xf32>
      %28 = arith.addf %25, %27 : vector<8x128xf32>
      %c0_20 = arith.constant 0 : index
      %c0_21 = arith.constant 0 : index
      %29 = vector.load %arg7[%c0_20, %c0_21] : memref<8x128xf32, #tpu.memory_space<vmem>>, vector<8x128xf32>
      tpu.vector_store %arg7[%c0_20, %c0_21], %28 {strides = array<i32>} : memref<8x128xf32, #tpu.memory_space<vmem>>, vector<8x128xf32>,
      %c0_22 = arith.constant 0 : index
      %c0_23 = arith.constant 0 : index
      %30 = vector.load %arg8[%c0_22, %c0_23] : memref<8x128xf32, #tpu.memory_space<vmem>>, vector<8x128xf32>
      %31 = vector.shape_cast %8 : vector<2x1x8x128xf32> to vector<2x8x128xf32>
      %cst_24 = arith.constant dense<0.000000e+00> : vector<8x128xf32>
      %32 = vector.multi_reduction <add>, %31, %cst_24 [0] : vector<2x8x128xf32> to vector<8x128xf32>
      %33 = arith.addf %30, %32 : vector<8x128xf32>
      %c0_25 = arith.constant 0 : index
      %c0_26 = arith.constant 0 : index
      %34 = vector.load %arg8[%c0_25, %c0_26] : memref<8x128xf32, #tpu.memory_space<vmem>>, vector<8x128xf32>
      tpu.vector_store %arg8[%c0_25, %c0_26], %33 {strides = array<i32>} : memref<8x128xf32, #tpu.memory_space<vmem>>, vector<8x128xf32>,
    } else {
    }
    %true = arith.constant true
    %17 = arith.xori %14, %true : i1
    %18 = arith.extui %17 : i1 to i32
    %c0_i32_15 = arith.constant 0 : i32
    %19 = arith.cmpi ne, %18, %c0_i32_15 : i32
    scf.if %19 {
      %c2_i32_18 = arith.constant 2 : i32
      %25 = arith.muli %arg0, %c2_i32_18 : i32
      %26 = tpu.iota {dimensions = array<i32: 0>} : vector<2x1x8x128xi32>
      %27 = vector.broadcast %25 : i32 to vector<2x1x8x128xi32>
      %28 = arith.addi %27, %26 : vector<2x1x8x128xi32>
      %c2_i32_19 = arith.constant 2 : i32
      %29 = vector.broadcast %c2_i32_19 : i32 to vector<2x1x8x128xi32>
      %30 = arith.cmpi slt, %28, %29 : vector<2x1x8x128xi32>
      %c0_20 = arith.constant 0 : index
      %c0_21 = arith.constant 0 : index
      %31 = vector.load %arg7[%c0_20, %c0_21] : memref<8x128xf32, #tpu.memory_space<vmem>>, vector<8x128xf32>
      %cst = arith.constant 0.000000e+00 : f32
      %32 = vector.broadcast %cst : f32 to vector<2x1x8x128xf32>
      %33 = arith.select %30, %11, %32 : vector<2x1x8x128xi1>, vector<2x1x8x128xf32>
      %34 = vector.shape_cast %33 : vector<2x1x8x128xf32> to vector<2x8x128xf32>
      %cst_22 = arith.constant dense<0.000000e+00> : vector<8x128xf32>
      %35 = vector.multi_reduction <add>, %34, %cst_22 [0] : vector<2x8x128xf32> to vector<8x128xf32>
      %36 = arith.addf %31, %35 : vector<8x128xf32>
      %c0_23 = arith.constant 0 : index
      %c0_24 = arith.constant 0 : index
      %37 = vector.load %arg7[%c0_23, %c0_24] : memref<8x128xf32, #tpu.memory_space<vmem>>, vector<8x128xf32>
      tpu.vector_store %arg7[%c0_23, %c0_24], %36 {strides = array<i32>} : memref<8x128xf32, #tpu.memory_space<vmem>>, vector<8x128xf32>,
      %c0_25 = arith.constant 0 : index
      %c0_26 = arith.constant 0 : index
      %38 = vector.load %arg8[%c0_25, %c0_26] : memref<8x128xf32, #tpu.memory_space<vmem>>, vector<8x128xf32>
      %cst_27 = arith.constant 0.000000e+00 : f32
      %39 = vector.broadcast %cst_27 : f32 to vector<2x1x8x128xf32>
      %40 = arith.select %30, %8, %39 : vector<2x1x8x128xi1>, vector<2x1x8x128xf32>
      %41 = vector.shape_cast %40 : vector<2x1x8x128xf32> to vector<2x8x128xf32>
      %cst_28 = arith.constant dense<0.000000e+00> : vector<8x128xf32>
      %42 = vector.multi_reduction <add>, %41, %cst_28 [0] : vector<2x8x128xf32> to vector<8x128xf32>
      %43 = arith.addf %38, %42 : vector<8x128xf32>
      %c0_29 = arith.constant 0 : index
      %c0_30 = arith.constant 0 : index
      %44 = vector.load %arg8[%c0_29, %c0_30] : memref<8x128xf32, #tpu.memory_space<vmem>>, vector<8x128xf32>
      tpu.vector_store %arg8[%c0_29, %c0_30], %43 {strides = array<i32>} : memref<8x128xf32, #tpu.memory_space<vmem>>, vector<8x128xf32>,
    } else {
    }
    %c0_i32_16 = arith.constant 0 : i32
    %20 = arith.cmpi eq, %arg0, %c0_i32_16 : i32
    %c3_i32 = arith.constant 3 : i32
    %21 = arith.cmpi eq, %arg1, %c3_i32 : i32
    %22 = arith.andi %20, %21 : i1
    %23 = arith.extui %22 : i1 to i32
    %c0_i32_17 = arith.constant 0 : i32
    %24 = arith.cmpi ne, %23, %c0_i32_17 : i32
    scf.if %24 {
      %c0_18 = arith.constant 0 : index
      %c0_19 = arith.constant 0 : index
      %25 = vector.load %arg7[%c0_18, %c0_19] : memref<8x128xf32, #tpu.memory_space<vmem>>, vector<8x128xf32>
      %c0_20 = arith.constant 0 : index
      %c0_21 = arith.constant 0 : index
      %26 = vector.load %arg5[%c0_20, %c0_21] : memref<8x128xf32, #tpu.memory_space<vmem>>, vector<8x128xf32>
      tpu.vector_store %arg5[%c0_20, %c0_21], %25 {strides = array<i32>} : memref<8x128xf32, #tpu.memory_space<vmem>>, vector<8x128xf32>,
      %c0_22 = arith.constant 0 : index
      %c0_23 = arith.constant 0 : index
      %27 = vector.load %arg8[%c0_22, %c0_23] : memref<8x128xf32, #tpu.memory_space<vmem>>, vector<8x128xf32>
      %c0_24 = arith.constant 0 : index
      %c0_25 = arith.constant 0 : index
      %28 = vector.load %arg6[%c0_24, %c0_25] : memref<8x128xf32, #tpu.memory_space<vmem>>, vector<8x128xf32>
      tpu.vector_store %arg6[%c0_24, %c0_25], %27 {strides = array<i32>} : memref<8x128xf32, #tpu.memory_space<vmem>>, vector<8x128xf32>,
    } else {
    }
    return
  }
  func.func @transform_0(%arg0: i32, %arg1: i32) -> (i32, i32, i32, i32) {
    %c0_i32 = arith.constant 0 : i32
    %c0_i32_0 = arith.constant 0 : i32
    %c0_i32_1 = arith.constant 0 : i32
    return %arg0, %arg1, %c0_i32, %c0_i32_0 : i32, i32, i32, i32
  }
  func.func @transform_1(%arg0: i32, %arg1: i32) -> (i32, i32, i32, i32) {
    %c0_i32 = arith.constant 0 : i32
    %c0_i32_0 = arith.constant 0 : i32
    %c0_i32_1 = arith.constant 0 : i32
    return %arg0, %arg1, %c0_i32, %c0_i32_0 : i32, i32, i32, i32
  }
  func.func @transform_2(%arg0: i32, %arg1: i32) -> (i32, i32, i32, i32) {
    %c0_i32 = arith.constant 0 : i32
    %c0_i32_0 = arith.constant 0 : i32
    %c0_i32_1 = arith.constant 0 : i32
    %c0_i32_2 = arith.constant 0 : i32
    return %arg0, %c0_i32, %c0_i32_0, %c0_i32_1 : i32, i32, i32, i32
  }
  func.func @transform_3(%arg0: i32, %arg1: i32) -> (i32, i32) {
    %c0_i32 = arith.constant 0 : i32
    %c0_i32_0 = arith.constant 0 : i32
    %c0_i32_1 = arith.constant 0 : i32
    return %c0_i32, %c0_i32_0 : i32, i32
  }
  func.func @transform_4(%arg0: i32, %arg1: i32) -> (i32, i32) {
    %c0_i32 = arith.constant 0 : i32
    %c0_i32_0 = arith.constant 0 : i32
    %c0_i32_1 = arith.constant 0 : i32
    return %c0_i32, %c0_i32_0 : i32, i32
  }
}

</mosaic_0001>

<llo_original>
// kernel: tpu_custom_call.1
$region0: #{tpu_custom_call.1}
  #allocation0 [shape = 'u32[]', space=smem, size = 0x4, offset = 0x4, fixed_abs, tag = 'smem constant byte address 0x4 - core index']
  #allocation1 [shape = 'u32[144,128]{1,0:T(1,128)}', space=vmem, size = 0x12000, scoped, tag = 'internal scratch']
  #allocation2 [shape = 'f32[8,128]{1,0:T(8,128)}', space=vmem, size = 0x1000, scoped, tag = 'scratch operand']
  #allocation3 [shape = 'f32[8,128]{1,0:T(8,128)}', space=vmem, size = 0x1000, scoped, tag = 'scratch operand']
  %s0 = inlined_call_operand.hbm [shape: f32[2,4,8,128], index: 0, kind: input, shape index: {}]
  %s1 = inlined_call_operand.hbm [shape: f32[2,4,8,128], index: 1, kind: input, shape index: {}]
  %s2 = inlined_call_operand.vmem [shape: s8[2,1,8,128], index: 2, kind: input, shape index: {}]
  %s3 = inlined_call_operand.hbm [shape: f32[8,128], index: 3, kind: output, shape index: {0}]
  %s4 = inlined_call_operand.hbm [shape: f32[8,128], index: 4, kind: output, shape index: {1}]
  %5 = xla_tuple %s3, %s4
  %s6 = sld [smem:[#allocation0]]
  $region77: #{tpu_custom_call.1} parent=0
    _
  %s8 = ssub.s32 1, %s6
  %s9 = scalar_select 0, %s8, %s6
  $region1: #{tpu_custom_call.1} parent=0
    #allocation4 [shape = 'u8[16384]{0}', space=vmem, size = 0x4000, scoped, tag = 'input window, operand 0']
    #allocation5 [shape = 's32[2]{0}', space=sflag, size = 0x8, scoped, tag = 'scoped memory for tpu_custom_call.1']
    #allocation6 [shape = 's32[2]{0}', space=sflag, size = 0x8, scoped, tag = 'scoped memory for tpu_custom_call.1']
    #allocation7 [shape = 'u8[16384]{0}', space=vmem, size = 0x4000, scoped, tag = 'input window, operand 1']
    #allocation8 [shape = 's32[2]{0}', space=sflag, size = 0x8, scoped, tag = 'scoped memory for tpu_custom_call.1']
    #allocation9 [shape = 'u8[4096]{0}', space=vmem, size = 0x1000, scoped, tag = 'output window, operand 0, single buffered']
    #allocation10 [shape = 'u8[4096]{0}', space=vmem, size = 0x1000, scoped, tag = 'output window, operand 1, single buffered']
    #allocation11 [shape = 's32[1]{0}', space=sflag, size = 0x4, scoped, tag = 'scoped memory for tpu_custom_call.1']
    %10 = vsyncpa [#allocation5], 0
    %s11 = scalar_lea.sflag [#allocation5], 1
    %12 = vsyncpa %s11, 0
    %13 = vsyncpa [#allocation8], 0
    %s14 = scalar_lea.sflag [#allocation8], 1
    %15 = vsyncpa %s14, 0
    %16 = vsyncpa [#allocation6], 0
    %17 = vsyncpa [#allocation11], 0
    loop: start=0, step=1, limit=6
    $region2: #{tpu_custom_call.1} parent=1 // loop_pre_header
      _
    $region3: #{tpu_custom_call.1} parent=1 // loop_header
      %s19 = sphi 0, %s23
      %p20 = scmp.ge.s32.totalorder %s19, 6
      %s26 = sphi 0, %s38
      %s27 = sphi 0, %s34
      %s28 = sphi 0, %s26
      %s29 = sphi 0, %s27
      %s30 = sphi 0, %s28
      %s31 = sphi 0, %s29
      %s43 = sphi 0, %s45
      %s46 = sphi 0, %s43
      %s47 = sphi 0, %s46
      %s63 = sphi 0, %s47
      %s71 = sphi 0, %s73
      %s74 = sphi 0, %s71
      %s75 = sphi 0, %s74
      %s91 = sphi 0, %s75
      %s97 = sphi 0, %s99
      %s100 = sphi 0, %s97
      %s101 = sphi 0, %s100
      %s117 = sphi 0, %s101
      %s121 = sphi 0, %s121
      %s123 = sphi 0, %s121
      %s124 = sphi 0, %s123
      %s138 = sphi 0, %s124
      %s142 = sphi 0, %s142
      %s144 = sphi 0, %s142
      %s145 = sphi 0, %s144
      %s159 = sphi 0, %s145
    $region4: #{tpu_custom_call.1} parent=1 // loop_header_branch
      %22 = sbr.rel (%p20) target = $region8
    $region5: #{tpu_custom_call.1} parent=1 // loop_body
      %s24 = ssub.s32 %s19, 1
      %s25 = ssub.s32 %s19, 2
      %s32 = sadd.s32 1, %s27
      %p33 = scmp.ge.s32.totalorder %s32, 4
      %s34 = scalar_select %p33, 0, %s32
      %s35 = sadd.s32 1, %s26
      %s36 = scalar_select %p33, %s35, %s26
      %p37 = scmp.ge.s32.totalorder %s36, 1
      %s38 = scalar_select %p37, 0, %s36
      %s39 = ssub.s32 %s26, %s38
      %s40 = ssub.s32 %s27, %s34
      %s41 = sor.u32 %s39, %s40
      %p42 = scmp.eq.s32.totalorder %s41, 0
      %s44 = sadd.s32 %s43, 1
      %s45 = scalar_select %p42, %s43, %s44
      %p48 = pneg %p42
      %p49 = scmp.eq.s32.totalorder %s19, 3
      %p50 = por %p48, %p49
      %p51 = scmp.ne.s32.totalorder %s43, %s46
      %p52 = scmp.eq.s32.totalorder %s19, 0
      %p53 = por %p51, %p52
      %p54 = scmp.ne.s32.totalorder %s43, %s46
      %p55 = scmp.eq.s32.totalorder %s24, 3
      %p56 = por %p54, %p55
      %p57 = scmp.ne.s32.totalorder %s46, %s47
      %p58 = scmp.eq.s32.totalorder %s24, 0
      %p59 = por %p57, %p58
      %p60 = scmp.ne.s32.totalorder %s46, %s47
      %p61 = scmp.eq.s32.totalorder %s25, 3
      %p62 = por %p60, %p61
      %p64 = scmp.ne.s32.totalorder %s47, %s63
      %p65 = scmp.eq.s32.totalorder %s25, 0
      %p66 = por %p64, %p65
      %s67 = ssub.s32 %s26, %s38
      %s68 = ssub.s32 %s27, %s34
      %s69 = sor.u32 %s67, %s68
      %p70 = scmp.eq.s32.totalorder %s69, 0
      %s72 = sadd.s32 %s71, 1
      %s73 = scalar_select %p70, %s71, %s72
      %p76 = pneg %p70
      %p77 = scmp.eq.s32.totalorder %s19, 3
      %p78 = por %p76, %p77
      %p79 = scmp.ne.s32.totalorder %s71, %s74
      %p80 = scmp.eq.s32.totalorder %s19, 0
      %p81 = por %p79, %p80
      %p82 = scmp.ne.s32.totalorder %s71, %s74
      %p83 = scmp.eq.s32.totalorder %s24, 3
      %p84 = por %p82, %p83
      %p85 = scmp.ne.s32.totalorder %s74, %s75
      %p86 = scmp.eq.s32.totalorder %s24, 0
      %p87 = por %p85, %p86
      %p88 = scmp.ne.s32.totalorder %s74, %s75
      %p89 = scmp.eq.s32.totalorder %s25, 3
      %p90 = por %p88, %p89
      %p92 = scmp.ne.s32.totalorder %s75, %s91
      %p93 = scmp.eq.s32.totalorder %s25, 0
      %p94 = por %p92, %p93
      %s95 = ssub.s32 %s26, %s38
      %p96 = scmp.eq.s32.totalorder %s95, 0
      %s98 = sadd.s32 %s97, 1
      %s99 = scalar_select %p96, %s97, %s98
      %p102 = pneg %p96
      %p103 = scmp.eq.s32.totalorder %s19, 3
      %p104 = por %p102, %p103
      %p105 = scmp.ne.s32.totalorder %s97, %s100
      %p106 = scmp.eq.s32.totalorder %s19, 0
      %p107 = por %p105, %p106
      %p108 = scmp.ne.s32.totalorder %s97, %s100
      %p109 = scmp.eq.s32.totalorder %s24, 3
      %p110 = por %p108, %p109
      %p111 = scmp.ne.s32.totalorder %s100, %s101
      %p112 = scmp.eq.s32.totalorder %s24, 0
      %p113 = por %p111, %p112
      %p114 = scmp.ne.s32.totalorder %s100, %s101
      %p115 = scmp.eq.s32.totalorder %s25, 3
      %p116 = por %p114, %p115
      %p118 = scmp.ne.s32.totalorder %s101, %s117
      %p119 = scmp.eq.s32.totalorder %s25, 0
      %p120 = por %p118, %p119
      %s122 = sadd.s32 %s121, 1
      %p125 = scmp.eq.s32.totalorder %s19, 3
      %p126 = scmp.ne.s32.totalorder %s121, %s123
      %p127 = scmp.eq.s32.totalorder %s19, 0
      %p128 = por %p126, %p127
      %p129 = scmp.ne.s32.totalorder %s121, %s123
      %p130 = scmp.eq.s32.totalorder %s24, 3
      %p131 = por %p129, %p130
      %p132 = scmp.ne.s32.totalorder %s123, %s124
      %p133 = scmp.eq.s32.totalorder %s24, 0
      %p134 = por %p132, %p133
      %p135 = scmp.ne.s32.totalorder %s123, %s124
      %p136 = scmp.eq.s32.totalorder %s25, 3
      %p137 = por %p135, %p136
      %p139 = scmp.ne.s32.totalorder %s124, %s138
      %p140 = scmp.eq.s32.totalorder %s25, 0
      %p141 = por %p139, %p140
      %s143 = sadd.s32 %s142, 1
      %p146 = scmp.eq.s32.totalorder %s19, 3
      %p147 = scmp.ne.s32.totalorder %s142, %s144
      %p148 = scmp.eq.s32.totalorder %s19, 0
      %p149 = por %p147, %p148
      %p150 = scmp.ne.s32.totalorder %s142, %s144
      %p151 = scmp.eq.s32.totalorder %s24, 3
      %p152 = por %p150, %p151
      %p153 = scmp.ne.s32.totalorder %s144, %s145
      %p154 = scmp.eq.s32.totalorder %s24, 0
      %p155 = por %p153, %p154
      %p156 = scmp.ne.s32.totalorder %s144, %s145
      %p157 = scmp.eq.s32.totalorder %s25, 3
      %p158 = por %p156, %p157
      %p160 = scmp.ne.s32.totalorder %s145, %s159
      %p161 = scmp.eq.s32.totalorder %s25, 0
      %p162 = por %p160, %p161
      %p163 = scmp.le.s32.totalorder 1, %s19
      %p164 = scmp.lt.s32.totalorder %s19, 5
      %p165 = pnand %p163, %p164
      %p166 = pneg %p165
      // Predicated region
      $region9: #{tpu_custom_call.1} parent=5 // pred_check
        _
      $region10: #{tpu_custom_call.1} parent=5 // pred_check_branch
        %168 = sbr.rel (%p165) target = $region12
      $region11: #{tpu_custom_call.1} parent=5 // pred_region
        %s169 = ssub.s32 %s19, 1
        // Predicated region
        $region13: #{tpu_custom_call.1} parent=11 // pred_check
          %p170 = pneg %p113
        $region14: #{tpu_custom_call.1} parent=11 // pred_check_branch
          %172 = sbr.rel (%p170) target = $region16
        $region15: #{tpu_custom_call.1} parent=11 // pred_region
          %s173 = smul.u32 2, %s28
          %p174 = scmp.lt.s32.totalorder %s173, 1
          %s175 = scalar_select %p174, %s173, 1
          %s176 = smul.addr %s175, 2
          %s177 = scalar_lea.vmem %s2, %s176
          %s178 = smul.u32 2, %s28
        $region16: #{tpu_custom_call.1} parent=11 // pred_fallthru
          _
      $region12: #{tpu_custom_call.1} parent=5 // pred_fallthru
        _
      %p179 = scmp.lt.s32.totalorder %s19, 4
      // Predicated region
      $region17: #{tpu_custom_call.1} parent=5 // pred_check
        %p180 = pneg %p179
      $region18: #{tpu_custom_call.1} parent=5 // pred_check_branch
        %182 = sbr.rel (%p180) target = $region20
      $region19: #{tpu_custom_call.1} parent=5 // pred_region
        // Predicated region
        $region21: #{tpu_custom_call.1} parent=19 // pred_check
          %p183 = pneg %p53
        $region22: #{tpu_custom_call.1} parent=19 // pred_check_branch
          %185 = sbr.rel (%p183) target = $region24
        $region23: #{tpu_custom_call.1} parent=19 // pred_region
          %s186 = sand.u32 %s43, 1
          %s187 = scalar_lea.sflag [#allocation5], %s186
          %s188 = sand.u32 %s43, 1
          %s189 = smul.addr %s188, 16
          %s190 = scalar_lea.vmem [#allocation4], %s189
          %s191 = smul.u32 2, %s26
          %s193 = ssub.s32 256, 256
          %194 = vsyncadd %s187, %s193
          %s195 = smul.addr %s191, 4
          %s196 = sadd.s32 %s27, %s195
          %s197 = smul.addr %s196, 128
          %s198 = scalar_lea.hbm %s0, %s197
          %s199 = sshll.u32 %s190, 4
          %s200 = int_to_ptr.vmem [resolvable:$true] %s199
          %205 = dma.hbm_to_vmem [thread:$0]  %s198, 256, %s200, %s187, 512, 128, 8
        $region24: #{tpu_custom_call.1} parent=19 // pred_fallthru
          _
        // Predicated region
        $region25: #{tpu_custom_call.1} parent=19 // pred_check
          %p206 = pneg %p81
        $region26: #{tpu_custom_call.1} parent=19 // pred_check_branch
          %208 = sbr.rel (%p206) target = $region28
        $region27: #{tpu_custom_call.1} parent=19 // pred_region
          %s209 = sand.u32 %s71, 1
          %s210 = scalar_lea.sflag [#allocation8], %s209
          %s211 = sand.u32 %s71, 1
          %s212 = smul.addr %s211, 16
          %s213 = scalar_lea.vmem [#allocation7], %s212
          %s214 = smul.u32 2, %s26
          %s216 = ssub.s32 256, 256
          %217 = vsyncadd %s210, %s216
          %s218 = smul.addr %s214, 4
          %s219 = sadd.s32 %s27, %s218
          %s220 = smul.addr %s219, 128
          %s221 = scalar_lea.hbm %s1, %s220
          %s222 = sshll.u32 %s213, 4
          %s223 = int_to_ptr.vmem [resolvable:$true] %s222
          %228 = dma.hbm_to_vmem [thread:$0]  %s221, 256, %s223, %s210, 512, 128, 8
        $region28: #{tpu_custom_call.1} parent=19 // pred_fallthru
          _
      $region20: #{tpu_custom_call.1} parent=5 // pred_fallthru
        _
      %p229 = scmp.le.s32.totalorder 1, %s19
      %p230 = scmp.lt.s32.totalorder %s19, 5
      %p231 = pnand %p229, %p230
      %p232 = pneg %p231
      // Predicated region
      $region29: #{tpu_custom_call.1} parent=5 // pred_check
        _
      $region30: #{tpu_custom_call.1} parent=5 // pred_check_branch
        %234 = sbr.rel (%p231) target = $region32
      $region31: #{tpu_custom_call.1} parent=5 // pred_region
        %s235 = ssub.s32 %s19, 1
        %s236 = sand.u32 %s46, 1
        %s237 = scalar_lea.sflag [#allocation5], %s236
        %s238 = sand.u32 %s46, 1
        %s239 = smul.addr %s238, 16
        %s240 = scalar_lea.vmem [#allocation4], %s239
        // Predicated region
        $region33: #{tpu_custom_call.1} parent=31 // pred_check
          %p241 = pneg %p59
        $region34: #{tpu_custom_call.1} parent=31 // pred_check_branch
          %243 = sbr.rel (%p241) target = $region36
        $region35: #{tpu_custom_call.1} parent=31 // pred_region
          %244 = dma.done %s237, 256
        $region36: #{tpu_custom_call.1} parent=31 // pred_fallthru
          _
        %s245 = sand.u32 %s74, 1
        %s246 = scalar_lea.sflag [#allocation8], %s245
        %s247 = sand.u32 %s74, 1
        %s248 = smul.addr %s247, 16
        %s249 = scalar_lea.vmem [#allocation7], %s248
        // Predicated region
        $region37: #{tpu_custom_call.1} parent=31 // pred_check
          %p250 = pneg %p87
        $region38: #{tpu_custom_call.1} parent=31 // pred_check_branch
          %252 = sbr.rel (%p250) target = $region40
        $region39: #{tpu_custom_call.1} parent=31 // pred_region
          %253 = dma.done %s246, 256
        $region40: #{tpu_custom_call.1} parent=31 // pred_fallthru
          _
        %s254 = sand.u32 %s46, 1
        %s255 = scalar_lea.sflag [#allocation5], %s254
        %s256 = sand.u32 %s46, 1
        %s257 = smul.addr %s256, 16
        %s258 = scalar_lea.vmem [#allocation4], %s257
        %p259 = pneg %p59
        %p260 = pneg %p56
        %s261 = sand.u32 %s74, 1
        %s262 = scalar_lea.sflag [#allocation8], %s261
        %s263 = sand.u32 %s74, 1
        %s264 = smul.addr %s263, 16
        %s265 = scalar_lea.vmem [#allocation7], %s264
        %p266 = pneg %p87
        %p267 = pneg %p84
        %s268 = smul.u32 2, %s28
        %p269 = scmp.lt.s32.totalorder %s268, 1
        %s270 = scalar_select %p269, %s268, 1
        %s271 = smul.addr %s270, 2
        %s272 = scalar_lea.vmem %s2, %s271
        %p273 = pneg %p113
        %p274 = pneg %p110
        %p275 = pneg %p134
        %p276 = pneg %p131
        %p277 = pneg %p155
        %p278 = pneg %p152
        %s279 = smul.u32 2, %s28
        %s280 = smul.u32 2, %s28
        %s281 = smul.u32 2, %s28
        %p282 = scmp.lt.s32.totalorder %s281, 1
        %s283 = scalar_select %p282, %s281, 1
        %s284 = smul.addr %s283, 2
        %s285 = scalar_lea.vmem %s2, %s284
        %s286 = smul.u32 2, %s28
        %p287 = scmp.eq.s32.totalorder %s28, 0
        %p288 = scmp.eq.s32.totalorder %s29, 0
        %p289 = pnand %p287, %p288
        %p290 = pneg %p289
        // Predicated region
        $region41: #{tpu_custom_call.1} parent=31 // pred_check
          _
        $region42: #{tpu_custom_call.1} parent=31 // pred_check_branch
          %292 = sbr.rel (%p289) target = $region44
        $region43: #{tpu_custom_call.1} parent=31 // pred_region
          %293 = vst [vmem:[#allocation2] sm:$0xff] 0.0
          %294 = vst [vmem:[#allocation3] sm:$0xff] 0.0
        $region44: #{tpu_custom_call.1} parent=31 // pred_fallthru
          _
        %v295 = vld [vmem:[%s240] sm:$0xff]
        %v296 = vld [vmem:[%s240 + $0x8] sm:$0xff]
        %v297 = vld [vmem:[%s249] sm:$0xff]
        %v298 = vld [vmem:[%s249 + $0x8] sm:$0xff]
        %v299 = vld [vmem:[%s285] sm:$0x3]
        %v300 = vld [vmem:[%s285 + $0x2] sm:$0x3]
        %v301 = vunpack.c.0.s8 %v299
        %v302 = vunpack.c.0.s8 %v300
        %v303 = vcvt.s32.f32 %v301
        %v304 = vcvt.s32.f32 %v302
        %v305 = vsub.f32 %v295, %v297
        %v306 = vsub.f32 %v296, %v298
        %v307 = vmul.f32 %v305, %v305
        %v308 = vmul.f32 %v306, %v306
        %v309 = vmul.f32 %v307, %v303
        %v310 = vmul.f32 %v308, %v304
        %s311 = sadd.s32 %s28, 1
        %s312 = smul.u32 %s311, 2
        %p313 = scmp.le.s32.totalorder %s312, 2
        // Predicated region
        $region45: #{tpu_custom_call.1} parent=31 // pred_check
          %p314 = pneg %p313
        $region46: #{tpu_custom_call.1} parent=31 // pred_check_branch
          %316 = sbr.rel (%p314) target = $region48
        $region47: #{tpu_custom_call.1} parent=31 // pred_region
          %v317 = vld [vmem:[#allocation2] sm:$0xff]
          %v318 = vadd.f32 %v309, %v310
          %v319 = vadd.f32 %v317, %v318
          %320 = vst [vmem:[#allocation2] sm:$0xff] %v319
          %v321 = vld [vmem:[#allocation3] sm:$0xff]
          %v322 = vadd.f32 %v303, %v304
          %v323 = vadd.f32 %v321, %v322
          %324 = vst [vmem:[#allocation3] sm:$0xff] %v323
        $region48: #{tpu_custom_call.1} parent=31 // pred_fallthru
          _
        %p325 = scmp.gt.s32.totalorder %s312, 2
        // Predicated region
        $region49: #{tpu_custom_call.1} parent=31 // pred_check
          %p326 = pneg %p325
        $region50: #{tpu_custom_call.1} parent=31 // pred_check_branch
          %328 = sbr.rel (%p326) target = $region52
        $region51: #{tpu_custom_call.1} parent=31 // pred_region
          %s329 = smul.u32 %s28, 2
          %v330 = vstv %s329
          %v331 = vadd.s32 %v330, 1
          %vm332 = vcmp.lt.s32.totalorder %v330, 2
          %vm333 = vcmp.lt.s32.totalorder %v331, 2
          %v334 = vld [vmem:[#allocation2] sm:$0xff]
          %v335 = vsel %vm332, %v309, 0.0
          %v336 = vsel %vm333, %v310, 0.0
          %v337 = vadd.f32 %v335, %v336
          %v338 = vadd.f32 %v334, %v337
          %339 = vst [vmem:[#allocation2] sm:$0xff] %v338
          %v340 = vld [vmem:[#allocation3] sm:$0xff]
          %v341 = vsel %vm332, %v303, 0.0
          %v342 = vsel %vm333, %v304, 0.0
          %v343 = vadd.f32 %v341, %v342
          %v344 = vadd.f32 %v340, %v343
          %345 = vst [vmem:[#allocation3] sm:$0xff] %v344
        $region52: #{tpu_custom_call.1} parent=31 // pred_fallthru
          _
        %p346 = scmp.eq.s32.totalorder %s29, 3
        %p347 = pnand %p287, %p346
        %p348 = pneg %p347
        // Predicated region
        $region53: #{tpu_custom_call.1} parent=31 // pred_check
          _
        $region54: #{tpu_custom_call.1} parent=31 // pred_check_branch
          %350 = sbr.rel (%p347) target = $region56
        $region55: #{tpu_custom_call.1} parent=31 // pred_region
          %v351 = vld [vmem:[#allocation2] sm:$0xff]
          %352 = vst [vmem:[#allocation9] sm:$0xff] %v351
          %v353 = vld [vmem:[#allocation3] sm:$0xff]
          %354 = vst [vmem:[#allocation10] sm:$0xff] %v353
        $region56: #{tpu_custom_call.1} parent=31 // pred_fallthru
          _
        // Predicated region
        $region57: #{tpu_custom_call.1} parent=31 // pred_check
          %p355 = pneg %p131
        $region58: #{tpu_custom_call.1} parent=31 // pred_check_branch
          %357 = sbr.rel (%p355) target = $region60
        $region59: #{tpu_custom_call.1} parent=31 // pred_region
          %s359 = ssub.s32 128, 128
          %360 = vsyncadd [#allocation6], %s359
          %s362 = sshll.u32 [#allocation9], 4
          %s363 = int_to_ptr.vmem [resolvable:$true] %s362
          %365 = dma.vmem_to_hbm [thread:$0]  %s363, 128, %s3, [#allocation6]
        $region60: #{tpu_custom_call.1} parent=31 // pred_fallthru
          _
        // Predicated region
        $region61: #{tpu_custom_call.1} parent=31 // pred_check
          %p366 = pneg %p152
        $region62: #{tpu_custom_call.1} parent=31 // pred_check_branch
          %368 = sbr.rel (%p366) target = $region64
        $region63: #{tpu_custom_call.1} parent=31 // pred_region
          %s370 = ssub.s32 128, 128
          %371 = vsyncadd [#allocation11], %s370
          %s373 = sshll.u32 [#allocation10], 4
          %s374 = int_to_ptr.vmem [resolvable:$true] %s373
          %376 = dma.vmem_to_hbm [thread:$0]  %s374, 128, %s4, [#allocation11]
        $region64: #{tpu_custom_call.1} parent=31 // pred_fallthru
          _
        // Predicated region
        $region65: #{tpu_custom_call.1} parent=31 // pred_check
          %p377 = pneg %p131
        $region66: #{tpu_custom_call.1} parent=31 // pred_check_branch
          %379 = sbr.rel (%p377) target = $region68
        $region67: #{tpu_custom_call.1} parent=31 // pred_region
          %380 = dma.done [#allocation6], 128
        $region68: #{tpu_custom_call.1} parent=31 // pred_fallthru
          _
        // Predicated region
        $region69: #{tpu_custom_call.1} parent=31 // pred_check
          %p381 = pneg %p152
        $region70: #{tpu_custom_call.1} parent=31 // pred_check_branch
          %383 = sbr.rel (%p381) target = $region72
        $region71: #{tpu_custom_call.1} parent=31 // pred_region
          %384 = dma.done [#allocation11], 128
        $region72: #{tpu_custom_call.1} parent=31 // pred_fallthru
          _
      $region32: #{tpu_custom_call.1} parent=5 // pred_fallthru
        _
      %p385 = scmp.le.s32.totalorder 2, %s19
      // Predicated region
      $region73: #{tpu_custom_call.1} parent=5 // pred_check
        %p386 = pneg %p385
      $region74: #{tpu_custom_call.1} parent=5 // pred_check_branch
        %388 = sbr.rel (%p386) target = $region76
      $region75: #{tpu_custom_call.1} parent=5 // pred_region
        %s389 = ssub.s32 %s19, 2
      $region76: #{tpu_custom_call.1} parent=5 // pred_fallthru
        _
    $region6: #{tpu_custom_call.1} parent=1 // loop_footer
      %s23 = sadd.s32 1, %s19
    $region7: #{tpu_custom_call.1} parent=1 // loop_footer_branch
      %18 = sbr.rel target = $region3
    $region8: #{tpu_custom_call.1} parent=1 // loop_exit
      _
    %390 = vsyncpa [#allocation5], 1
    %s391 = scalar_lea.sflag [#allocation5], 1
    %392 = vsyncpa %s391, 1
    %393 = vsyncpa [#allocation8], 1
    %s394 = scalar_lea.sflag [#allocation8], 1
    %395 = vsyncpa %s394, 1
    %396 = vsyncpa [#allocation6], 1
    %s397 = scalar_lea.sflag [#allocation6], 1
    %398 = vsyncpa %s397, 1
    %399 = vsyncpa [#allocation11], 1

</llo_original>
